<compile_context>
chip_gen: v6e
topology: v6e:2x2x1
jax: 0.10.0
libtpu: 0.0.40
codegen_flags: <defaults>
</compile_context>

<pallas_src>
import functools

import jax
import jax.numpy as jnp
from jax.experimental import pallas as pl
from jax.experimental.pallas import tpu as pltpu

N_RANKS = 5          # hand_emb vocab   (Embedder(5, 64))
N_PREV_ACTS = 6      # action_emb vocab (Embedder(6, 64))
EMB = 64
HID1, HID2 = 64, 64
LEAKY_SLOPE = 0.01   # F.leaky_relu default negative_slope


def _round_up(x, m):
    return (x + m - 1) // m * m


def _make_kernel(nC, nA, rank_col, act_col, bet_col, TB, training, noise_std):
    n_direct = nA - 2          # flat slots 0..n_direct-1 are check/fold/call

    def kernel(*refs):
        if training:
            (state_ref, mask_ref, u_ref, z_ref,
             combo_ref, w1b_ref, w2_ref, b2_ref, w3_ref, b3_ref,
             probs_ref, misc_ref) = refs
        else:
            (state_ref, mask_ref, u_ref,
             combo_ref, w1b_ref, w2_ref, b2_ref, w3_ref, b3_ref,
             probs_ref, misc_ref) = refs
            z_ref = None

        # ---- feature extraction (static column slices of the raw state) ----
        hand = state_ref[:, rank_col:rank_col + 1].astype(jnp.int32)    # (TB,1)
        prev = state_ref[:, act_col:act_col + 1].astype(jnp.int32)      # (TB,1)
        prev_bet = state_ref[:, bet_col:bet_col + 1]                    # (TB,1) f32

        # ---- fc1: pre-fused (hand,prev_action) table + betsize rank-1 term ----
        combo = hand * N_PREV_ACTS + prev                               # (TB,1)
        combo_oh = (jax.lax.broadcasted_iota(
            jnp.int32, (TB, N_RANKS * N_PREV_ACTS), 1) == combo).astype(jnp.float32)
        h1 = (jnp.dot(combo_oh, combo_ref[...], preferred_element_type=jnp.float32)
              + prev_bet * w1b_ref[...])
        h1 = jnp.where(h1 >= 0, h1, LEAKY_SLOPE * h1)                   # leaky_relu

        # ---- fc2 ----
        h2 = jnp.dot(h1, w2_ref[...], preferred_element_type=jnp.float32) + b2_ref[...]
        h2 = jnp.where(h2 >= 0, h2, LEAKY_SLOPE * h2)

        # ---- fc3 (+ GaussianNoise in training mode) ----
        logits = jnp.dot(h2, w3_ref[...], preferred_element_type=jnp.float32) + b3_ref[...]
        if training and noise_std > 0.0:
            # TODO(synk): GaussianNoise source is not in the spec; assumed the
            # common "relative, detached" form: x + sigma * x * N(0,1).
            # Eval mode is identity (noise only applied when training=True).
            logits = logits + noise_std * logits * z_ref[...]

        # ---- softmax + norm_frequencies ----
        # softmax denominator cancels under the masked renormalization, so the
        # final probs are exactly exp(logit-m)*mask / sum(exp(logit-m)*mask).
        m = jnp.max(logits, axis=-1, keepdims=True)
        e = jnp.exp(logits - m) * mask_ref[...]
        denom = jnp.maximum(jnp.sum(e, axis=-1, keepdims=True), 1e-30)  # guard all-masked rows
        probs = e / denom
        probs_ref[...] = probs

        # ---- Categorical(probs).sample() via inverse CDF ----
        # cumsum realised as probs @ upper-triangular (nC tiny -> cheap MXU op).
        row = jax.lax.broadcasted_iota(jnp.int32, (nC, nC), 0)
        col = jax.lax.broadcasted_iota(jnp.int32, (nC, nC), 1)
        tri = (row <= col).astype(jnp.float32)
        cum = jnp.dot(probs, tri, preferred_element_type=jnp.float32)   # (TB,nC)
        u = u_ref[...]                                                  # (TB,1)
        action = jnp.sum((cum < u).astype(jnp.int32), axis=-1, keepdims=True)
        action = jnp.minimum(action, nC - 1)

        # ---- log_prob of the sampled action (select first, log after -> no NaN) ----
        sel = (jax.lax.broadcasted_iota(jnp.int32, (TB, nC), 1) == action).astype(jnp.float32)
        p_sel = jnp.maximum(jnp.sum(sel * probs, axis=-1, keepdims=True), 1e-30)
        logprob = jnp.log(p_sel)

        # ---- unwrap_action (NetworkFunctions) ----
        # TODO(synk): NetworkFunctions.unwrap_action source is not in the spec;
        # assumed convention: flat slots [0, nA-2) map directly to
        # check/fold/call with betsize 0; slots >= nA-2 are aggressive with
        # betsize = slot-(nA-2), category raise if previous action was bet/raise
        # else bet.
        is_aggr_prev = jnp.logical_or(prev == 3, prev == 4)
        action_category = jnp.where(action < n_direct, action,
                                    jnp.where(is_aggr_prev, nA - 1, nA - 2))
        betsize_cat = jnp.where(action < n_direct, 0, action - n_direct)

        # packed float32 output slab: [action, action_category, betsize, log_prob]
        misc_ref[...] = jnp.concatenate(
            [action.astype(jnp.float32),
             action_category.astype(jnp.float32),
             betsize_cat.astype(jnp.float32),
             logprob], axis=-1)

    return kernel


def init_params(key, nA, nB):
    nC = nA - 2 + nB
    ks = jax.random.split(key, 8)
    p = {}
    p['hand_tbl'] = jax.random.normal(ks[0], (N_RANKS, EMB), jnp.float32) * 0.1
    p['act_tbl'] = jax.random.normal(ks[1], (N_PREV_ACTS, EMB), jnp.float32) * 0.1
    fan1 = 2 * EMB + 1   # fc1 = nn.Linear(129, hidden)
    p['w1'] = jax.random.normal(ks[2], (fan1, HID1), jnp.float32) * (1.0 / jnp.sqrt(fan1))
    p['b1'] = jax.random.normal(ks[3], (1, HID1), jnp.float32) * 0.01
    p['w2'] = jax.random.normal(ks[4], (HID1, HID2), jnp.float32) * (1.0 / jnp.sqrt(HID1))
    p['b2'] = jax.random.normal(ks[5], (1, HID2), jnp.float32) * 0.01
    p['w3'] = jax.random.normal(ks[6], (HID2, nC), jnp.float32) * (1.0 / jnp.sqrt(HID2))
    p['b3'] = jax.random.normal(ks[7], (1, nC), jnp.float32) * 0.01
    return p


def flat_betsize_actor_forward(state, action_mask, betsize_mask, params, mapping,
                               rng_key, *, nA, nB, training=False, noise_std=0.05):
    """state: (B, nS) float32; action_mask: (B, nA); betsize_mask: (B, nB)."""
    B, nS = state.shape
    nC = nA - 2 + nB

    # combined_masks: concat(action_mask[:, :nA-2], betsize_mask)
    mask = jnp.concatenate(
        [action_mask[:, :nA - 2], betsize_mask], axis=-1).astype(jnp.float32)

    # Pre-fuse embedding tables + b1 into fc1: one (5*6, H1) combo table plus the
    # previous_betsize weight row.
    w1 = params['w1'].astype(jnp.float32)
    w1h, w1a, w1b = w1[:EMB], w1[EMB:2 * EMB], w1[2 * EMB:2 * EMB + 1]
    combo_tbl = ((params['hand_tbl'] @ w1h)[:, None, :]
                 + (params['act_tbl'] @ w1a)[None, :, :]
                 + params['b1'][None, :, :]).reshape(N_RANKS * N_PREV_ACTS, HID1)
    combo_tbl = combo_tbl.astype(jnp.float32)

    # Batch tiling: pad B to a multiple of the (8-aligned) tile size.
    TB = min(256, _round_up(max(B, 1), 8))
    B_pad = _round_up(B, TB)
    state_f = state.astype(jnp.float32)
    if B_pad != B:
        state_f = jnp.pad(state_f, ((0, B_pad - B), (0, 0)))
        mask = jnp.pad(mask, ((0, B_pad - B), (0, 0)), constant_values=1.0)

    # Host-side RNG (interpret-safe): sampling uniform + optional Gaussian noise.
    k_u, k_z = jax.random.split(rng_key)
    u = jax.random.uniform(k_u, (B_pad, 1), jnp.float32, minval=1e-7, maxval=1.0)

    kernel = _make_kernel(nC, nA,
                          mapping['rank'], mapping['previous_action'],
                          mapping['previous_betsize'],
                          TB, training, noise_std)

    row_spec = lambda w: pl.BlockSpec((TB, w), lambda i: (i, 0))
    res_spec = lambda r, c: pl.BlockSpec((r, c), lambda i: (0, 0))

    inputs = [state_f, mask, u]
    in_specs = [row_spec(nS), row_spec(nC), row_spec(1)]
    if training:
        z = jax.random.normal(k_z, (B_pad, nC), jnp.float32)
        inputs.append(z)
        in_specs.append(row_spec(nC))
    inputs += [combo_tbl, w1b,
               params['w2'].astype(jnp.float32), params['b2'].astype(jnp.float32),
               params['w3'].astype(jnp.float32), params['b3'].astype(jnp.float32)]
    in_specs += [res_spec(N_RANKS * N_PREV_ACTS, HID1),  # fused fc1 combo table
                 res_spec(1, HID1),                      # fc1 betsize row
                 res_spec(HID1, HID2),                   # w2
                 res_spec(1, HID2),                      # b2
                 res_spec(HID2, nC),                     # w3
                 res_spec(1, nC)]                        # b3

    probs, misc = pl.pallas_call(
        kernel,
        out_shape=(jax.ShapeDtypeStruct((B_pad, nC), jnp.float32),
                   jax.ShapeDtypeStruct((B_pad, 4), jnp.float32)),
        grid_spec=pltpu.PrefetchScalarGridSpec(
            num_scalar_prefetch=0,
            grid=(B_pad // TB,),
            in_specs=in_specs,
            out_specs=(row_spec(nC), row_spec(4)),
        ),
        compiler_params=pltpu.CompilerParams(
            dimension_semantics=("parallel",)),
    )(*inputs)

    action = misc[:B, 0].astype(jnp.int32)
    action_category = misc[:B, 1].astype(jnp.int32)
    betsize = misc[:B, 2].astype(jnp.int32)
    action_prob = misc[:B, 3]

    return {'action': action,
            'action_category': action_category,
            'action_prob': action_prob,
            'action_probs': probs[:B],
            'betsize': betsize}


if __name__ == "__main__":
    key = jax.random.PRNGKey(0)
    k_param, k_state, k_run = jax.random.split(key, 3)

    B, nS, nA, nB = 2, 8, 5, 4
    nC = nA - 2 + nB
    mapping = {'rank': 0, 'previous_action': 1, 'previous_betsize': 2}

    params = init_params(k_param, nA, nB)

    # state columns: 0=hand rank in [0,5), 1=previous action in [0,6),
    # 2=previous betsize (float), rest are unused features.
    kh, ka, kb, kr = jax.random.split(k_state, 4)
    hand = jax.random.randint(kh, (B,), 0, N_RANKS)
    prev = jax.random.randint(ka, (B,), 0, N_PREV_ACTS)
    pbet = jax.random.uniform(kb, (B,), jnp.float32)
    rest = jax.random.normal(kr, (B, nS - 3), jnp.float32)
    state = jnp.concatenate(
        [hand[:, None].astype(jnp.float32),
         prev[:, None].astype(jnp.float32),
         pbet[:, None], rest], axis=-1)

    # masks: every row keeps at least one valid combined action
    action_mask = jnp.array([[1., 1., 1., 1., 1.],
                             [1., 0., 1., 1., 1.]], jnp.float32)   # (B, nA)
    betsize_mask = jnp.array([[1., 1., 0., 1.],
                              [0., 1., 1., 1.]], jnp.float32)      # (B, nB)

    out = flat_betsize_actor_forward(state, action_mask, betsize_mask,
                                     params, mapping, k_run,
                                     nA=nA, nB=nB, training=False)
    jax.block_until_ready(out)

    assert out['action'].shape == (B,)
    assert out['action_category'].shape == (B,)
    assert out['betsize'].shape == (B,)
    assert out['action_prob'].shape == (B,)
    assert out['action_probs'].shape == (B, nC)
    # probs must be non-negative, masked, and normalized
    assert bool(jnp.all(out['action_probs'] >= 0))
    assert bool(jnp.allclose(jnp.sum(out['action_probs'], axis=-1), 1.0, atol=1e-5))
    print("KERNEL_OK")
</pallas_src>

<mosaic_0001>
module attributes {stable_mosaic.version = 11 : i64} {
  func.func @kernel(%arg0: i32, %arg1: memref<8x8xf32, #tpu.memory_space<vmem>>, %arg2: memref<8x7xf32, #tpu.memory_space<vmem>>, %arg3: memref<8x1xf32, #tpu.memory_space<vmem>>, %arg4: memref<30x64xf32, #tpu.memory_space<vmem>>, %arg5: memref<1x64xf32, #tpu.memory_space<vmem>>, %arg6: memref<64x64xf32, #tpu.memory_space<vmem>>, %arg7: memref<1x64xf32, #tpu.memory_space<vmem>>, %arg8: memref<64x7xf32, #tpu.memory_space<vmem>>, %arg9: memref<1x7xf32, #tpu.memory_space<vmem>>, %arg10: memref<8x7xf32, #tpu.memory_space<vmem>>, %arg11: memref<8x4xf32, #tpu.memory_space<vmem>>) attributes {dimension_semantics = [#tpu.dimension_semantics<parallel>], iteration_bounds = array<i64: 1>, scalar_prefetch = 0 : i64, scratch_operands = 0 : i64, tpu.core_type = #tpu.core_type<tc>, window_params = [{transform_indices = @transform_0, window_bounds = array<i64: 8, 8>}, {transform_indices = @transform_1, window_bounds = array<i64: 8, 7>}, {transform_indices = @transform_2, window_bounds = array<i64: 8, 1>}, {pipeline_mode = #tpu.pipeline_mode<synchronous>, transform_indices = @transform_3, window_bounds = array<i64: 30, 64>}, {pipeline_mode = #tpu.pipeline_mode<synchronous>, transform_indices = @transform_4, window_bounds = array<i64: 1, 64>}, {pipeline_mode = #tpu.pipeline_mode<synchronous>, transform_indices = @transform_5, window_bounds = array<i64: 64, 64>}, {pipeline_mode = #tpu.pipeline_mode<synchronous>, transform_indices = @transform_6, window_bounds = array<i64: 1, 64>}, {pipeline_mode = #tpu.pipeline_mode<synchronous>, transform_indices = @transform_7, window_bounds = array<i64: 64, 7>}, {pipeline_mode = #tpu.pipeline_mode<synchronous>, transform_indices = @transform_8, window_bounds = array<i64: 1, 7>}, {transform_indices = @transform_9, window_bounds = array<i64: 8, 7>}, {transform_indices = @transform_10, window_bounds = array<i64: 8, 4>}]} {
    %c0 = arith.constant 0 : index
    %c0_0 = arith.constant 0 : index
    %0 = vector.load %arg1[%c0, %c0_0] : memref<8x8xf32, #tpu.memory_space<vmem>>, vector<8x1xf32>
    %1 = arith.fptosi %0 : vector<8x1xf32> to vector<8x1xi32>
    %c0_1 = arith.constant 0 : index
    %c1 = arith.constant 1 : index
    %2 = vector.load %arg1[%c0_1, %c1] : memref<8x8xf32, #tpu.memory_space<vmem>>, vector<8x1xf32>
    %3 = arith.fptosi %2 : vector<8x1xf32> to vector<8x1xi32>
    %c0_2 = arith.constant 0 : index
    %c2 = arith.constant 2 : index
    %4 = vector.load %arg1[%c0_2, %c2] : memref<8x8xf32, #tpu.memory_space<vmem>>, vector<8x1xf32>
    %c6_i32 = arith.constant 6 : i32
    %5 = vector.broadcast %c6_i32 : i32 to vector<8x1xi32>
    %6 = arith.muli %1, %5 : vector<8x1xi32>
    %7 = arith.addi %6, %3 : vector<8x1xi32>
    %8 = tpu.iota {dimensions = array<i32: 1>} : vector<8x30xi32>
    %9 = vector.broadcast %7 : vector<8x1xi32> to vector<8x30xi32>
    %10 = arith.cmpi eq, %8, %9 : vector<8x30xi32>
    %11 = arith.extui %10 : vector<8x30xi1> to vector<8x30xi32>
    %12 = arith.sitofp %11 : vector<8x30xi32> to vector<8x30xf32>
    %c0_3 = arith.constant 0 : index
    %c0_4 = arith.constant 0 : index
    %13 = vector.load %arg4[%c0_3, %c0_4] : memref<30x64xf32, #tpu.memory_space<vmem>>, vector<30x64xf32>
    %cst = arith.constant dense<0.000000e+00> : vector<8x64xf32>
    %14 = tpu.matmul %12, %13, %cst {dimension_numbers = #tpu.dot_dimension_numbers<[1], [0], [0], [1], [0, 0, 1, 1], [], []>} : vector<8x30xf32>, vector<30x64xf32>, vector<8x64xf32> -> vector<8x64xf32>
    %c0_5 = arith.constant 0 : index
    %c0_6 = arith.constant 0 : index
    %15 = vector.load %arg5[%c0_5, %c0_6] : memref<1x64xf32, #tpu.memory_space<vmem>>, vector<1x64xf32>
    %16 = vector.broadcast %4 : vector<8x1xf32> to vector<8x64xf32>
    %17 = vector.broadcast %15 : vector<1x64xf32> to vector<8x64xf32>
    %18 = arith.mulf %16, %17 : vector<8x64xf32>
    %19 = arith.addf %14, %18 : vector<8x64xf32>
    %cst_7 = arith.constant 0.000000e+00 : f32
    %20 = vector.broadcast %cst_7 : f32 to vector<8x64xf32>
    %21 = arith.cmpf oge, %19, %20 : vector<8x64xf32>
    %cst_8 = arith.constant 0.00999999977 : f32
    %22 = vector.broadcast %cst_8 : f32 to vector<8x64xf32>
    %23 = arith.mulf %22, %19 : vector<8x64xf32>
    %24 = arith.select %21, %19, %23 : vector<8x64xi1>, vector<8x64xf32>
    %c0_9 = arith.constant 0 : index
    %c0_10 = arith.constant 0 : index
    %25 = vector.load %arg6[%c0_9, %c0_10] : memref<64x64xf32, #tpu.memory_space<vmem>>, vector<64x64xf32>
    %cst_11 = arith.constant dense<0.000000e+00> : vector<8x64xf32>
    %26 = tpu.matmul %24, %25, %cst_11 {dimension_numbers = #tpu.dot_dimension_numbers<[1], [0], [0], [1], [0, 0, 1, 1], [], []>} : vector<8x64xf32>, vector<64x64xf32>, vector<8x64xf32> -> vector<8x64xf32>
    %c0_12 = arith.constant 0 : index
    %c0_13 = arith.constant 0 : index
    %27 = vector.load %arg7[%c0_12, %c0_13] : memref<1x64xf32, #tpu.memory_space<vmem>>, vector<1x64xf32>
    %28 = vector.broadcast %27 : vector<1x64xf32> to vector<8x64xf32>
    %29 = arith.addf %26, %28 : vector<8x64xf32>
    %cst_14 = arith.constant 0.000000e+00 : f32
    %30 = vector.broadcast %cst_14 : f32 to vector<8x64xf32>
    %31 = arith.cmpf oge, %29, %30 : vector<8x64xf32>
    %cst_15 = arith.constant 0.00999999977 : f32
    %32 = vector.broadcast %cst_15 : f32 to vector<8x64xf32>
    %33 = arith.mulf %32, %29 : vector<8x64xf32>
    %34 = arith.select %31, %29, %33 : vector<8x64xi1>, vector<8x64xf32>
    %c0_16 = arith.constant 0 : index
    %c0_17 = arith.constant 0 : index
    %35 = vector.load %arg8[%c0_16, %c0_17] : memref<64x7xf32, #tpu.memory_space<vmem>>, vector<64x7xf32>
    %cst_18 = arith.constant dense<0.000000e+00> : vector<8x7xf32>
    %36 = tpu.matmul %34, %35, %cst_18 {dimension_numbers = #tpu.dot_dimension_numbers<[1], [0], [0], [1], [0, 0, 1, 1], [], []>} : vector<8x64xf32>, vector<64x7xf32>, vector<8x7xf32> -> vector<8x7xf32>
    %c0_19 = arith.constant 0 : index
    %c0_20 = arith.constant 0 : index
    %37 = vector.load %arg9[%c0_19, %c0_20] : memref<1x7xf32, #tpu.memory_space<vmem>>, vector<1x7xf32>
    %38 = vector.broadcast %37 : vector<1x7xf32> to vector<8x7xf32>
    %39 = arith.addf %36, %38 : vector<8x7xf32>
    %cst_21 = arith.constant dense<0xFF800000> : vector<8xf32>
    %40 = vector.multi_reduction <maximumf>, %39, %cst_21 [1] : vector<8x7xf32> to vector<8xf32>
    %41 = vector.shape_cast %40 : vector<8xf32> to vector<8x1xf32>
    %42 = vector.broadcast %41 : vector<8x1xf32> to vector<8x7xf32>
    %43 = arith.subf %39, %42 : vector<8x7xf32>
    %44 = math.exp %43 : vector<8x7xf32>
    %c0_22 = arith.constant 0 : index
    %c0_23 = arith.constant 0 : index
    %45 = vector.load %arg2[%c0_22, %c0_23] : memref<8x7xf32, #tpu.memory_space<vmem>>, vector<8x7xf32>
    %46 = arith.mulf %44, %45 : vector<8x7xf32>
    %cst_24 = arith.constant dense<0.000000e+00> : vector<8xf32>
    %47 = vector.multi_reduction <add>, %46, %cst_24 [1] : vector<8x7xf32> to vector<8xf32>
    %48 = vector.shape_cast %47 : vector<8xf32> to vector<8x1xf32>
    %cst_25 = arith.constant 1.000000e-30 : f32
    %49 = vector.broadcast %cst_25 : f32 to vector<8x1xf32>
    %50 = arith.maximumf %48, %49 : vector<8x1xf32>
    %51 = vector.broadcast %50 : vector<8x1xf32> to vector<8x7xf32>
    %52 = arith.divf %46, %51 : vector<8x7xf32>
    %c0_26 = arith.constant 0 : index
    %c0_27 = arith.constant 0 : index
    %53 = vector.load %arg10[%c0_26, %c0_27] : memref<8x7xf32, #tpu.memory_space<vmem>>, vector<8x7xf32>
    tpu.vector_store %arg10[%c0_26, %c0_27], %52 {strides = array<i32>} : memref<8x7xf32, #tpu.memory_space<vmem>>, vector<8x7xf32>,
    %54 = tpu.iota {dimensions = array<i32: 0>} : vector<7x7xi32>
    %55 = tpu.iota {dimensions = array<i32: 1>} : vector<7x7xi32>
    %56 = arith.cmpi sle, %54, %55 : vector<7x7xi32>
    %57 = arith.extui %56 : vector<7x7xi1> to vector<7x7xi32>
    %58 = arith.sitofp %57 : vector<7x7xi32> to vector<7x7xf32>
    %cst_28 = arith.constant dense<0.000000e+00> : vector<8x7xf32>
    %59 = tpu.matmul %52, %58, %cst_28 {dimension_numbers = #tpu.dot_dimension_numbers<[1], [0], [0], [1], [0, 0, 1, 1], [], []>} : vector<8x7xf32>, vector<7x7xf32>, vector<8x7xf32> -> vector<8x7xf32>
    %c0_29 = arith.constant 0 : index
    %c0_30 = arith.constant 0 : index
    %60 = vector.load %arg3[%c0_29, %c0_30] : memref<8x1xf32, #tpu.memory_space<vmem>>, vector<8x1xf32>
    %61 = vector.broadcast %60 : vector<8x1xf32> to vector<8x7xf32>
    %62 = arith.cmpf olt, %59, %61 : vector<8x7xf32>
    %63 = arith.extui %62 : vector<8x7xi1> to vector<8x7xi32>
    %cst_31 = arith.constant dense<0> : vector<8xi32>
    %64 = vector.multi_reduction <add>, %63, %cst_31 [1] : vector<8x7xi32> to vector<8xi32>
    %65 = vector.shape_cast %64 : vector<8xi32> to vector<8x1xi32>
    %c6_i32_32 = arith.constant 6 : i32
    %66 = vector.broadcast %c6_i32_32 : i32 to vector<8x1xi32>
    %67 = arith.minsi %65, %66 : vector<8x1xi32>
    %68 = tpu.iota {dimensions = array<i32: 1>} : vector<8x7xi32>
    %69 = vector.broadcast %67 : vector<8x1xi32> to vector<8x7xi32>
    %70 = arith.cmpi eq, %68, %69 : vector<8x7xi32>
    %71 = arith.extui %70 : vector<8x7xi1> to vector<8x7xi32>
    %72 = arith.sitofp %71 : vector<8x7xi32> to vector<8x7xf32>
    %73 = arith.mulf %72, %52 : vector<8x7xf32>
    %cst_33 = arith.constant dense<0.000000e+00> : vector<8xf32>
    %74 = vector.multi_reduction <add>, %73, %cst_33 [1] : vector<8x7xf32> to vector<8xf32>
    %75 = vector.shape_cast %74 : vector<8xf32> to vector<8x1xf32>
    %cst_34 = arith.constant 1.000000e-30 : f32
    %76 = vector.broadcast %cst_34 : f32 to vector<8x1xf32>
    %77 = arith.maximumf %75, %76 : vector<8x1xf32>
    %78 = math.log %77 : vector<8x1xf32>
    %c3_i32 = arith.constant 3 : i32
    %79 = vector.broadcast %c3_i32 : i32 to vector<8x1xi32>
    %80 = arith.cmpi eq, %3, %79 : vector<8x1xi32>
    %c4_i32 = arith.constant 4 : i32
    %81 = vector.broadcast %c4_i32 : i32 to vector<8x1xi32>
    %82 = arith.cmpi eq, %3, %81 : vector<8x1xi32>
    %83 = arith.ori %80, %82 : vector<8x1xi1>
    %c3_i32_35 = arith.constant 3 : i32
    %84 = vector.broadcast %c3_i32_35 : i32 to vector<8x1xi32>
    %85 = arith.cmpi slt, %67, %84 : vector<8x1xi32>
    %c4_i32_36 = arith.constant 4 : i32
    %c3_i32_37 = arith.constant 3 : i32
    %86 = vector.broadcast %c4_i32_36 : i32 to vector<8x1xi32>
    %87 = vector.broadcast %c3_i32_37 : i32 to vector<8x1xi32>
    %88 = arith.select %83, %86, %87 : vector<8x1xi1>, vector<8x1xi32>
    %89 = arith.select %85, %67, %88 : vector<8x1xi1>, vector<8x1xi32>
    %c3_i32_38 = arith.constant 3 : i32
    %90 = vector.broadcast %c3_i32_38 : i32 to vector<8x1xi32>
    %91 = arith.cmpi slt, %67, %90 : vector<8x1xi32>
    %c3_i32_39 = arith.constant 3 : i32
    %92 = vector.broadcast %c3_i32_39 : i32 to vector<8x1xi32>
    %93 = arith.subi %67, %92 : vector<8x1xi32>
    %c0_i32 = arith.constant 0 : i32
    %94 = vector.broadcast %c0_i32 : i32 to vector<8x1xi32>
    %95 = arith.select %91, %94, %93 : vector<8x1xi1>, vector<8x1xi32>
    %96 = arith.sitofp %67 : vector<8x1xi32> to vector<8x1xf32>
    %97 = arith.sitofp %89 : vector<8x1xi32> to vector<8x1xf32>
    %98 = arith.sitofp %95 : vector<8x1xi32> to vector<8x1xf32>
    %99 = tpu.concatenate %96, %97, %98, %78 in 1 : vector<8x1xf32>, vector<8x1xf32>, vector<8x1xf32>, vector<8x1xf32> -> vector<8x4xf32>
    %c0_40 = arith.constant 0 : index
    %c0_41 = arith.constant 0 : index
    %100 = vector.load %arg11[%c0_40, %c0_41] : memref<8x4xf32, #tpu.memory_space<vmem>>, vector<8x4xf32>
    tpu.vector_store %arg11[%c0_40, %c0_41], %99 {strides = array<i32>} : memref<8x4xf32, #tpu.memory_space<vmem>>, vector<8x4xf32>,
    return
  }
  func.func @transform_0(%arg0: i32) -> (i32, i32) {
    %c0_i32 = arith.constant 0 : i32
    %c0_i32_0 = arith.constant 0 : i32
    return %arg0, %c0_i32 : i32, i32
  }
  func.func @transform_1(%arg0: i32) -> (i32, i32) {
    %c0_i32 = arith.constant 0 : i32
    %c0_i32_0 = arith.constant 0 : i32
    return %arg0, %c0_i32 : i32, i32
  }
  func.func @transform_2(%arg0: i32) -> (i32, i32) {
    %c0_i32 = arith.constant 0 : i32
    %c0_i32_0 = arith.constant 0 : i32
    return %arg0, %c0_i32 : i32, i32
  }
  func.func @transform_3(%arg0: i32) -> (i32, i32) {
    %c0_i32 = arith.constant 0 : i32
    %c0_i32_0 = arith.constant 0 : i32
    %c0_i32_1 = arith.constant 0 : i32
    return %c0_i32, %c0_i32_0 : i32, i32
  }
  func.func @transform_4(%arg0: i32) -> (i32, i32) {
    %c0_i32 = arith.constant 0 : i32
    %c0_i32_0 = arith.constant 0 : i32
    %c0_i32_1 = arith.constant 0 : i32
    return %c0_i32, %c0_i32_0 : i32, i32
  }
  func.func @transform_5(%arg0: i32) -> (i32, i32) {
    %c0_i32 = arith.constant 0 : i32
    %c0_i32_0 = arith.constant 0 : i32
    %c0_i32_1 = arith.constant 0 : i32
    return %c0_i32, %c0_i32_0 : i32, i32
  }
  func.func @transform_6(%arg0: i32) -> (i32, i32) {
    %c0_i32 = arith.constant 0 : i32
    %c0_i32_0 = arith.constant 0 : i32
    %c0_i32_1 = arith.constant 0 : i32
    return %c0_i32, %c0_i32_0 : i32, i32
  }
  func.func @transform_7(%arg0: i32) -> (i32, i32) {
    %c0_i32 = arith.constant 0 : i32
    %c0_i32_0 = arith.constant 0 : i32
    %c0_i32_1 = arith.constant 0 : i32
    return %c0_i32, %c0_i32_0 : i32, i32
  }
  func.func @transform_8(%arg0: i32) -> (i32, i32) {
    %c0_i32 = arith.constant 0 : i32
    %c0_i32_0 = arith.constant 0 : i32
    %c0_i32_1 = arith.constant 0 : i32
    return %c0_i32, %c0_i32_0 : i32, i32
  }
  func.func @transform_9(%arg0: i32) -> (i32, i32) {
    %c0_i32 = arith.constant 0 : i32
    %c0_i32_0 = arith.constant 0 : i32
    return %arg0, %c0_i32 : i32, i32
  }
  func.func @transform_10(%arg0: i32) -> (i32, i32) {
    %c0_i32 = arith.constant 0 : i32
    %c0_i32_0 = arith.constant 0 : i32
    return %arg0, %c0_i32 : i32, i32
  }
}

</mosaic_0001>

<llo_original>
// kernel: tpu_custom_call.1
$region0: #{tpu_custom_call.1}
  #allocation0 [shape = 'u32[]', space=smem, size = 0x4, offset = 0x4, fixed_abs, tag = 'smem constant byte address 0x4 - core index']
  #allocation1 [shape = 'u32[144,128]{1,0:T(1,128)}', space=vmem, size = 0x12000, scoped, tag = 'internal scratch']
  %s0 = inlined_call_operand.vmem [shape: f32[8,8], index: 0, kind: input, shape index: {}]
  %s1 = inlined_call_operand.vmem [shape: f32[8,7], index: 1, kind: input, shape index: {}]
  %s2 = inlined_call_operand.vmem [shape: f32[8,1], index: 2, kind: input, shape index: {}]
  %s3 = inlined_call_operand.hbm [shape: f32[30,64], index: 3, kind: input, shape index: {}]
  %s4 = inlined_call_operand.vmem [shape: f32[1,64], index: 4, kind: input, shape index: {}]
  %s5 = inlined_call_operand.vmem [shape: f32[64,64], index: 5, kind: input, shape index: {}]
  %s6 = inlined_call_operand.vmem [shape: f32[1,64], index: 6, kind: input, shape index: {}]
  %s7 = inlined_call_operand.vmem [shape: f32[64,7], index: 7, kind: input, shape index: {}]
  %s8 = inlined_call_operand.vmem [shape: f32[1,7], index: 8, kind: input, shape index: {}]
  %s9 = inlined_call_operand.hbm [shape: f32[8,7], index: 9, kind: output, shape index: {0}]
  %s10 = inlined_call_operand.vmem [shape: f32[8,4], index: 10, kind: output, shape index: {1}]
  %11 = xla_tuple %s9, %s10
  %s12 = sld [smem:[#allocation0]]
  $region58: #{tpu_custom_call.1} parent=0
    _
  %s14 = ssub.s32 1, %s12
  %s15 = scalar_select 0, %s14, %s12
  $region1: #{tpu_custom_call.1} parent=0
    #allocation2 [shape = 'u8[16384]{0}', space=vmem, size = 0x4000, scoped, tag = 'input window, operand 3, single buffered']
    #allocation3 [shape = 's32[1]{0}', space=sflag, size = 0x4, scoped, tag = 'scoped memory for tpu_custom_call.1']
    #allocation4 [shape = 's32[1]{0}', space=sflag, size = 0x4, scoped, tag = 'scoped memory for tpu_custom_call.1']
    #allocation5 [shape = 'u8[4096]{0}', space=vmem, size = 0x1000, scoped, tag = 'output window, operand 0, single buffered']
    %16 = vsyncpa [#allocation3], 0
    %17 = vsyncpa [#allocation4], 0
    // Predicated region
    $region2: #{tpu_custom_call.1} parent=1 // pred_check
      _
    $region3: #{tpu_custom_call.1} parent=1 // pred_check_branch
      %19 = sbr.rel (0) target = $region5
    $region4: #{tpu_custom_call.1} parent=1 // pred_region
      _
    $region5: #{tpu_custom_call.1} parent=1 // pred_fallthru
      _
    // Predicated region
    $region6: #{tpu_custom_call.1} parent=1 // pred_check
      _
    $region7: #{tpu_custom_call.1} parent=1 // pred_check_branch
      %21 = sbr.rel (0) target = $region9
    $region8: #{tpu_custom_call.1} parent=1 // pred_region
      _
    $region9: #{tpu_custom_call.1} parent=1 // pred_fallthru
      _
    // Predicated region
    $region10: #{tpu_custom_call.1} parent=1 // pred_check
      _
    $region11: #{tpu_custom_call.1} parent=1 // pred_check_branch
      %23 = sbr.rel (0) target = $region13
    $region12: #{tpu_custom_call.1} parent=1 // pred_region
      _
    $region13: #{tpu_custom_call.1} parent=1 // pred_fallthru
      _
    // Predicated region
    $region14: #{tpu_custom_call.1} parent=1 // pred_check
      _
    $region15: #{tpu_custom_call.1} parent=1 // pred_check_branch
      %25 = sbr.rel (0) target = $region17
    $region16: #{tpu_custom_call.1} parent=1 // pred_region
      %s27 = ssub.s32 512, 512
      %28 = vsyncadd [#allocation3], %s27
      %s29 = sshll.u32 [#allocation2], 4
      %s30 = int_to_ptr.vmem [resolvable:$true] %s29
      %35 = dma.hbm_to_vmem [thread:$0]  %s3, 512, %s30, [#allocation3], 128, 128, 8
    $region17: #{tpu_custom_call.1} parent=1 // pred_fallthru
      _
    // Predicated region
    $region18: #{tpu_custom_call.1} parent=1 // pred_check
      _
    $region19: #{tpu_custom_call.1} parent=1 // pred_check_branch
      %37 = sbr.rel (0) target = $region21
    $region20: #{tpu_custom_call.1} parent=1 // pred_region
      _
    $region21: #{tpu_custom_call.1} parent=1 // pred_fallthru
      _
    // Predicated region
    $region22: #{tpu_custom_call.1} parent=1 // pred_check
      _
    $region23: #{tpu_custom_call.1} parent=1 // pred_check_branch
      %39 = sbr.rel (0) target = $region25
    $region24: #{tpu_custom_call.1} parent=1 // pred_region
      _
    $region25: #{tpu_custom_call.1} parent=1 // pred_fallthru
      _
    // Predicated region
    $region26: #{tpu_custom_call.1} parent=1 // pred_check
      _
    $region27: #{tpu_custom_call.1} parent=1 // pred_check_branch
      %41 = sbr.rel (0) target = $region29
    $region28: #{tpu_custom_call.1} parent=1 // pred_region
      _
    $region29: #{tpu_custom_call.1} parent=1 // pred_fallthru
      _
    // Predicated region
    $region30: #{tpu_custom_call.1} parent=1 // pred_check
      _
    $region31: #{tpu_custom_call.1} parent=1 // pred_check_branch
      %43 = sbr.rel (0) target = $region33
    $region32: #{tpu_custom_call.1} parent=1 // pred_region
      _
    $region33: #{tpu_custom_call.1} parent=1 // pred_fallthru
      _
    // Predicated region
    $region34: #{tpu_custom_call.1} parent=1 // pred_check
      _
    $region35: #{tpu_custom_call.1} parent=1 // pred_check_branch
      %45 = sbr.rel (0) target = $region37
    $region36: #{tpu_custom_call.1} parent=1 // pred_region
      _
    $region37: #{tpu_custom_call.1} parent=1 // pred_fallthru
      _
    // Predicated region
    $region38: #{tpu_custom_call.1} parent=1 // pred_check
      _
    $region39: #{tpu_custom_call.1} parent=1 // pred_check_branch
      %47 = sbr.rel (0) target = $region41
    $region40: #{tpu_custom_call.1} parent=1 // pred_region
      %48 = dma.done [#allocation3], 512
    $region41: #{tpu_custom_call.1} parent=1 // pred_fallthru
      _
    %v49 = vld [vmem:[%s0] sm:$0xff]
    %v50 = vcvt.f32.s32.to.zero.pseudo %v49
    %v51 = vmul.u32 %v50, 6
    %52 = vrot.lane.b32.xlu0 %v50, 127
    %v53 = vpop.permute.xlu0 %52
    %v54 = vadd.s32 %v51, %v53
    %v55 = vlaneseq
    %v56 = vand.u32 %v55, 127
    %57 = vset.pattern.permute.xlu0 0
    %58 = vperm.xlu0 %57, %v54
    %v59 = vpop.permute.xlu0 %58
    %vm60 = vcmp.eq.s32.totalorder %v56, %v59
    %v61 = vsel %vm60, 1, 0
    %v62 = vcvt.s32.f32 %v61
    %v63 = vld [vmem:[#allocation2] sm:$0xff]
    %v64 = vld [vmem:[#allocation2 + $0x8] sm:$0xff]
    %v65 = vld [vmem:[#allocation2 + $0x10] sm:$0xff]
    %v66 = vld [vmem:[#allocation2 + $0x18] sm:$0x3f]
    %v67 = vld [vmem:[%s4] sm:$0x1]
    %69 = vset.pattern.permute.xlu0 2
    %70 = vperm.xlu0 %69, %v49
    %v71 = vpop.permute.xlu0 %70
    %v74 = vlaneseq
    %v75 = vshrl.u32 %v74, 7
    %v76 = vsub.s32 0, %v75
    %v77 = vrot.slane %v67, %v76
    %v79 = vmul.f32 %v71, %v77
    %vm80 = vcmask 244736
    %v82 = vsel %vm80, %v62, 0
    %vm84 = vcmask 1045504
    %v86 = vsel %vm84, %v66, 0
    %88 = vmatprep.subr.mxu0 0.0
    %89 = vmatpush1.msra.mxu0 0.0
    %90 = vmatprep.subr.mxu0 0.0
    %91 = vmatpush1.msra.mxu0 0.0
    %92 = vmatprep.subr.mxu0 0.0
    %93 = vmatpush1.msra.mxu0 0.0
    %94 = vmatprep.subr.mxu0 0.0
    %95 = vmatpush1.msra.mxu0 0.0
    %96 = vmatprep.subr.mxu0 0.0
    %97 = vmatpush1.msra.mxu0 0.0
    %98 = vmatprep.subr.mxu0 0.0
    %99 = vmatpush1.msra.mxu0 0.0
    %100 = vmatprep.subr.mxu0 0.0
    %101 = vmatpush1.msra.mxu0 0.0
    %102 = vmatprep.subr.mxu0 0.0
    %103 = vmatpush1.msra.mxu0 0.0
    %104 = vmatprep.subr.mxu0 0.0
    %105 = vmatpush1.msra.mxu0 0.0
    %106 = vmatprep.subr.mxu0 0.0
    %107 = vmatpush1.msra.mxu0 0.0
    %108 = vmatprep.subr.mxu0 0.0
    %109 = vmatpush1.msra.mxu0 0.0
    %110 = vmatprep.subr.mxu0 0.0
    %111 = vmatpush1.msra.mxu0 0.0
    %112 = vmatprep.subr.mxu0 0.0
    %113 = vmatpush1.msra.mxu0 %v86
    %114 = vmatprep.subr.mxu0 0.0
    %115 = vmatpush1.msra.mxu0 %v65
    %116 = vmatprep.subr.mxu0 0.0
    %117 = vmatpush1.msra.mxu0 %v64
    %118 = vmatprep.subr.mxu0 0.0
    %119 = vmatpush1.msra.mxu0 %v63
    %120 = vmatprep.subr.mxu0 0.0
    %121 = vmatpush2.msra.mxu0 0.0
    %122 = vmatprep.subr.mxu0 0.0
    %123 = vmatpush2.msra.mxu0 0.0
    %124 = vmatprep.subr.mxu0 0.0
    %125 = vmatpush2.msra.mxu0 0.0
    %126 = vmatprep.subr.mxu0 0.0
    %127 = vmatpush2.msra.mxu0 0.0
    %128 = vmatprep.subr.mxu0 0.0
    %129 = vmatpush2.msra.mxu0 0.0
    %130 = vmatprep.subr.mxu0 0.0
    %131 = vmatpush2.msra.mxu0 0.0
    %132 = vmatprep.subr.mxu0 0.0
    %133 = vmatpush2.msra.mxu0 0.0
    %134 = vmatprep.subr.mxu0 0.0
    %135 = vmatpush2.msra.mxu0 0.0
    %136 = vmatprep.subr.mxu0 0.0
    %137 = vmatpush2.msra.mxu0 0.0
    %138 = vmatprep.subr.mxu0 0.0
    %139 = vmatpush2.msra.mxu0 0.0
    %140 = vmatprep.subr.mxu0 0.0
    %141 = vmatpush2.msra.mxu0 0.0
    %142 = vmatprep.subr.mxu0 0.0
    %143 = vmatpush2.msra.mxu0 0.0
    %144 = vmatprep.subr.mxu0 0.0
    %145 = vmatpush2.msra.mxu0 0.0
    %146 = vmatprep.subr.mxu0 0.0
    %147 = vmatpush2.msra.mxu0 0.0
    %148 = vmatprep.subr.mxu0 0.0
    %149 = vmatpush2.msra.mxu0 0.0
    %150 = vmatprep.subr.mxu0 0.0
    %151 = vmatpush2.msra.mxu0 0.0
    %152 = vmatprep.mubr.f32.mxu0 0.0
    %153 = vmatmul.mubr.f32.gmra.mxu0 %v82
    %v154 = vpop.f32.mrf.mxu0
    %v155 = vadd.f32 %v79, %v154
    %v156 = vpop.f32.mrf.mxu0
    %157 = vdwg.mxu0
    %vm158 = vcmp.ge.f32.partialorder %v155, 0.0
    %v159 = vmul.f32 %v155, 0.01
    %v160 = vsel %vm158, %v155, %v159
    %v161 = vld [vmem:[%s5] sm:$0xff]
    %v162 = vld [vmem:[%s5 + $0x8] sm:$0xff]
    %v163 = vld [vmem:[%s5 + $0x10] sm:$0xff]
    %v164 = vld [vmem:[%s5 + $0x18] sm:$0xff]
    %v165 = vld [vmem:[%s5 + $0x20] sm:$0xff]
    %v166 = vld [vmem:[%s5 + $0x28] sm:$0xff]
    %v167 = vld [vmem:[%s5 + $0x30] sm:$0xff]
    %v168 = vld [vmem:[%s5 + $0x38] sm:$0xff]
    %v169 = vld [vmem:[%s6] sm:$0x1]
    %v171 = vlaneseq
    %v172 = vshrl.u32 %v171, 7
    %v173 = vsub.s32 0, %v172
    %v174 = vrot.slane %v169, %v173
    %vm176 = vcmask 523264
    %v178 = vsel %vm176, %v160, 0
    %180 = vmatprep.subr.mxu0 0.0
    %181 = vmatpush1.msra.mxu0 0.0
    %182 = vmatprep.subr.mxu0 0.0
    %183 = vmatpush1.msra.mxu0 0.0
    %184 = vmatprep.subr.mxu0 0.0
    %185 = vmatpush1.msra.mxu0 0.0
    %186 = vmatprep.subr.mxu0 0.0
    %187 = vmatpush1.msra.mxu0 0.0
    %188 = vmatprep.subr.mxu0 0.0
    %189 = vmatpush1.msra.mxu0 0.0
    %190 = vmatprep.subr.mxu0 0.0
    %191 = vmatpush1.msra.mxu0 0.0
    %192 = vmatprep.subr.mxu0 0.0
    %193 = vmatpush1.msra.mxu0 0.0
    %194 = vmatprep.subr.mxu0 0.0
    %195 = vmatpush1.msra.mxu0 0.0
    %196 = vmatprep.subr.mxu0 0.0
    %197 = vmatpush1.msra.mxu0 %v168
    %198 = vmatprep.subr.mxu0 0.0
    %199 = vmatpush1.msra.mxu0 %v167
    %200 = vmatprep.subr.mxu0 0.0
    %201 = vmatpush1.msra.mxu0 %v166
    %202 = vmatprep.subr.mxu0 0.0
    %203 = vmatpush1.msra.mxu0 %v165
    %204 = vmatprep.subr.mxu0 0.0
    %205 = vmatpush1.msra.mxu0 %v164
    %206 = vmatprep.subr.mxu0 0.0
    %207 = vmatpush1.msra.mxu0 %v163
    %208 = vmatprep.subr.mxu0 0.0
    %209 = vmatpush1.msra.mxu0 %v162
    %210 = vmatprep.subr.mxu0 0.0
    %211 = vmatpush1.msra.mxu0 %v161
    %212 = vmatprep.subr.mxu0 0.0
    %213 = vmatpush2.msra.mxu0 0.0
    %214 = vmatprep.subr.mxu0 0.0
    %215 = vmatpush2.msra.mxu0 0.0
    %216 = vmatprep.subr.mxu0 0.0
    %217 = vmatpush2.msra.mxu0 0.0
    %218 = vmatprep.subr.mxu0 0.0
    %219 = vmatpush2.msra.mxu0 0.0
    %220 = vmatprep.subr.mxu0 0.0
    %221 = vmatpush2.msra.mxu0 0.0
    %222 = vmatprep.subr.mxu0 0.0
    %223 = vmatpush2.msra.mxu0 0.0
    %224 = vmatprep.subr.mxu0 0.0
    %225 = vmatpush2.msra.mxu0 0.0
    %226 = vmatprep.subr.mxu0 0.0
    %227 = vmatpush2.msra.mxu0 0.0
    %228 = vmatprep.subr.mxu0 0.0
    %229 = vmatpush2.msra.mxu0 0.0
    %230 = vmatprep.subr.mxu0 0.0
    %231 = vmatpush2.msra.mxu0 0.0
    %232 = vmatprep.subr.mxu0 0.0
    %233 = vmatpush2.msra.mxu0 0.0
    %234 = vmatprep.subr.mxu0 0.0
    %235 = vmatpush2.msra.mxu0 0.0
    %236 = vmatprep.subr.mxu0 0.0
    %237 = vmatpush2.msra.mxu0 0.0
    %238 = vmatprep.subr.mxu0 0.0
    %239 = vmatpush2.msra.mxu0 0.0
    %240 = vmatprep.subr.mxu0 0.0
    %241 = vmatpush2.msra.mxu0 0.0
    %242 = vmatprep.subr.mxu0 0.0
    %243 = vmatpush2.msra.mxu0 0.0
    %244 = vmatprep.mubr.f32.mxu0 0.0
    %245 = vmatmul.mubr.f32.gmra.mxu0 %v178
    %v246 = vpop.f32.mrf.mxu0
    %v247 = vadd.f32 %v174, %v246
    %v248 = vpop.f32.mrf.mxu0
    %249 = vdwg.mxu0
    %vm250 = vcmp.ge.f32.partialorder %v247, 0.0
    %v251 = vmul.f32 %v247, 0.01
    %v252 = vsel %vm250, %v247, %v251
    %v253 = vld [vmem:[%s7] sm:$0xff]
    %v254 = vld [vmem:[%s7 + $0x8] sm:$0xff]
    %v255 = vld [vmem:[%s7 + $0x10] sm:$0xff]
    %v256 = vld [vmem:[%s7 + $0x18] sm:$0xff]
    %v257 = vld [vmem:[%s7 + $0x20] sm:$0xff]
    %v258 = vld [vmem:[%s7 + $0x28] sm:$0xff]
    %v259 = vld [vmem:[%s7 + $0x30] sm:$0xff]
    %v260 = vld [vmem:[%s7 + $0x38] sm:$0xff]
    %v261 = vld [vmem:[%s8] sm:$0x1]
    %v263 = vlaneseq
    %v264 = vshrl.u32 %v263, 7
    %v265 = vsub.s32 0, %v264
    %v266 = vrot.slane %v261, %v265
    %v269 = vsel %vm176, %v252, 0
    %271 = vmatprep.subr.mxu0 0.0
    %272 = vmatpush1.msra.mxu0 0.0
    %273 = vmatprep.subr.mxu0 0.0
    %274 = vmatpush1.msra.mxu0 0.0
    %275 = vmatprep.subr.mxu0 0.0
    %276 = vmatpush1.msra.mxu0 0.0
    %277 = vmatprep.subr.mxu0 0.0
    %278 = vmatpush1.msra.mxu0 0.0
    %279 = vmatprep.subr.mxu0 0.0
    %280 = vmatpush1.msra.mxu0 0.0
    %281 = vmatprep.subr.mxu0 0.0
    %282 = vmatpush1.msra.mxu0 0.0
    %283 = vmatprep.subr.mxu0 0.0
    %284 = vmatpush1.msra.mxu0 0.0
    %285 = vmatprep.subr.mxu0 0.0
    %286 = vmatpush1.msra.mxu0 0.0
    %287 = vmatprep.subr.mxu0 0.0
    %288 = vmatpush1.msra.mxu0 %v260
    %289 = vmatprep.subr.mxu0 0.0
    %290 = vmatpush1.msra.mxu0 %v259
    %291 = vmatprep.subr.mxu0 0.0
    %292 = vmatpush1.msra.mxu0 %v258
    %293 = vmatprep.subr.mxu0 0.0
    %294 = vmatpush1.msra.mxu0 %v257
    %295 = vmatprep.subr.mxu0 0.0
    %296 = vmatpush1.msra.mxu0 %v256
    %297 = vmatprep.subr.mxu0 0.0
    %298 = vmatpush1.msra.mxu0 %v255
    %299 = vmatprep.subr.mxu0 0.0
    %300 = vmatpush1.msra.mxu0 %v254
    %301 = vmatprep.subr.mxu0 0.0
    %302 = vmatpush1.msra.mxu0 %v253
    %303 = vmatprep.subr.mxu0 0.0
    %304 = vmatpush2.msra.mxu0 0.0
    %305 = vmatprep.subr.mxu0 0.0
    %306 = vmatpush2.msra.mxu0 0.0
    %307 = vmatprep.subr.mxu0 0.0
    %308 = vmatpush2.msra.mxu0 0.0
    %309 = vmatprep.subr.mxu0 0.0
    %310 = vmatpush2.msra.mxu0 0.0
    %311 = vmatprep.subr.mxu0 0.0
    %312 = vmatpush2.msra.mxu0 0.0
    %313 = vmatprep.subr.mxu0 0.0
    %314 = vmatpush2.msra.mxu0 0.0
    %315 = vmatprep.subr.mxu0 0.0
    %316 = vmatpush2.msra.mxu0 0.0
    %317 = vmatprep.subr.mxu0 0.0
    %318 = vmatpush2.msra.mxu0 0.0
    %319 = vmatprep.subr.mxu0 0.0
    %320 = vmatpush2.msra.mxu0 0.0
    %321 = vmatprep.subr.mxu0 0.0
    %322 = vmatpush2.msra.mxu0 0.0
    %323 = vmatprep.subr.mxu0 0.0
    %324 = vmatpush2.msra.mxu0 0.0
    %325 = vmatprep.subr.mxu0 0.0
    %326 = vmatpush2.msra.mxu0 0.0
    %327 = vmatprep.subr.mxu0 0.0
    %328 = vmatpush2.msra.mxu0 0.0
    %329 = vmatprep.subr.mxu0 0.0
    %330 = vmatpush2.msra.mxu0 0.0
    %331 = vmatprep.subr.mxu0 0.0
    %332 = vmatpush2.msra.mxu0 0.0
    %333 = vmatprep.subr.mxu0 0.0
    %334 = vmatpush2.msra.mxu0 0.0
    %335 = vmatprep.mubr.f32.mxu0 0.0
    %336 = vmatmul.mubr.f32.gmra.mxu0 %v269
    %v337 = vpop.f32.mrf.mxu0
    %v338 = vadd.f32 %v266, %v337
    %v339 = vpop.f32.mrf.mxu0
    %340 = vdwg.mxu0
    %vm341 = vcmask 56320
    %v342 = vsel %vm341, %v338, -inf
    %343 = vmax.xlane.f32.xlu0 %v342
    %v344 = vpop.xlane.xlu0 %343
    %v345 = vsub.f32 %v338, %v344
    %v346 = vmul.f32 %v345, 1.442695
    %v347 = vpow.pop %v346
    %v348 = vld [vmem:[%s1] sm:$0xff]
    %v349 = vmul.f32 %v347, %v348
    %v350 = vsel %vm341, %v349, 0.0
    %351 = vadd.xlane.f32.xlu0 %v350
    %v352 = vpop.xlane.xlu0 %351
    %v353 = vmax.f32 %v352, 1e-30
    %v354 = vrcp.pop %v353
    %v355 = vmul.f32 %v349, %v354
    %356 = vst.msk [vmem:[#allocation5] sm:$0xff] %vm341, %v355
    %v357 = vlaneseq
    %v358 = vshrl.u32 %v357, 7
    %vm359 = vcmp.le.s32.totalorder %v358, %v56
    %v360 = vsel %vm359, 1, 0
    %v361 = vcvt.s32.f32 %v360
    %v363 = vsel %vm341, %v355, 0
    %vm365 = vcmask 1046528
    %v367 = vsel %vm365, %v361, 0
    %369 = vmatprep.subr.mxu0 0.0
    %370 = vmatpush1.msra.mxu0 0.0
    %371 = vmatprep.subr.mxu0 0.0
    %372 = vmatpush1.msra.mxu0 0.0
    %373 = vmatprep.subr.mxu0 0.0
    %374 = vmatpush1.msra.mxu0 0.0
    %375 = vmatprep.subr.mxu0 0.0
    %376 = vmatpush1.msra.mxu0 0.0
    %377 = vmatprep.subr.mxu0 0.0
    %378 = vmatpush1.msra.mxu0 0.0
    %379 = vmatprep.subr.mxu0 0.0
    %380 = vmatpush1.msra.mxu0 0.0
    %381 = vmatprep.subr.mxu0 0.0
    %382 = vmatpush1.msra.mxu0 0.0
    %383 = vmatprep.subr.mxu0 0.0
    %384 = vmatpush1.msra.mxu0 0.0
    %385 = vmatprep.subr.mxu0 0.0
    %386 = vmatpush1.msra.mxu0 0.0
    %387 = vmatprep.subr.mxu0 0.0
    %388 = vmatpush1.msra.mxu0 0.0
    %389 = vmatprep.subr.mxu0 0.0
    %390 = vmatpush1.msra.mxu0 0.0
    %391 = vmatprep.subr.mxu0 0.0
    %392 = vmatpush1.msra.mxu0 0.0
    %393 = vmatprep.subr.mxu0 0.0
    %394 = vmatpush1.msra.mxu0 0.0
    %395 = vmatprep.subr.mxu0 0.0
    %396 = vmatpush1.msra.mxu0 0.0
    %397 = vmatprep.subr.mxu0 0.0
    %398 = vmatpush1.msra.mxu0 0.0
    %399 = vmatprep.subr.mxu0 0.0
    %400 = vmatpush1.msra.mxu0 %v367
    %401 = vmatprep.subr.mxu0 0.0
    %402 = vmatpush2.msra.mxu0 0.0
    %403 = vmatprep.subr.mxu0 0.0
    %404 = vmatpush2.msra.mxu0 0.0
    %405 = vmatprep.subr.mxu0 0.0
    %406 = vmatpush2.msra.mxu0 0.0
    %407 = vmatprep.subr.mxu0 0.0
    %408 = vmatpush2.msra.mxu0 0.0
    %409 = vmatprep.subr.mxu0 0.0
    %410 = vmatpush2.msra.mxu0 0.0
    %411 = vmatprep.subr.mxu0 0.0
    %412 = vmatpush2.msra.mxu0 0.0
    %413 = vmatprep.subr.mxu0 0.0
    %414 = vmatpush2.msra.mxu0 0.0
    %415 = vmatprep.subr.mxu0 0.0
    %416 = vmatpush2.msra.mxu0 0.0
    %417 = vmatprep.subr.mxu0 0.0
    %418 = vmatpush2.msra.mxu0 0.0
    %419 = vmatprep.subr.mxu0 0.0
    %420 = vmatpush2.msra.mxu0 0.0
    %421 = vmatprep.subr.mxu0 0.0
    %422 = vmatpush2.msra.mxu0 0.0
    %423 = vmatprep.subr.mxu0 0.0
    %424 = vmatpush2.msra.mxu0 0.0
    %425 = vmatprep.subr.mxu0 0.0
    %426 = vmatpush2.msra.mxu0 0.0
    %427 = vmatprep.subr.mxu0 0.0
    %428 = vmatpush2.msra.mxu0 0.0
    %429 = vmatprep.subr.mxu0 0.0
    %430 = vmatpush2.msra.mxu0 0.0
    %431 = vmatprep.subr.mxu0 0.0
    %432 = vmatpush2.msra.mxu0 0.0
    %433 = vmatprep.mubr.f32.mxu0 0.0
    %434 = vmatmul.mubr.f32.gmra.mxu0 %v363
    %v435 = vpop.f32.mrf.mxu0
    %v436 = vadd.f32 0.0, %v435
    %v437 = vpop.f32.mrf.mxu0
    %438 = vdwg.mxu0
    %v439 = vld [vmem:[%s2] sm:$0xff]
    %441 = vset.pattern.permute.xlu0 0
    %442 = vperm.xlu0 %441, %v439
    %v443 = vpop.permute.xlu0 %442
    %vm445 = vcmp.lt.f32.partialorder %v436, %v443
    %v446 = vsel %vm445, 1, 0
    %v447 = vsel %vm341, %v446, 0
    %v448 = vand.u32 %v447, 65535
    %v449 = vshrl.u32 %v447, 16
    %v450 = vcvt.s32.f32 %v448
    %v451 = vcvt.s32.f32 %v449
    %452 = vadd.xlane.f32.xlu0 %v450
    %v453 = vpop.xlane.xlu0 %452
    %454 = vadd.xlane.f32.xlu0 %v451
    %v455 = vpop.xlane.xlu0 %454
    %v456 = vcvt.f32.s32 %v453
    %v457 = vcvt.f32.s32 %v455
    %v458 = vshll.u32 %v457, 16
    %v459 = vadd.s32 %v458, %v456
    %vm460 = vcmp.lt.s32.totalorder %v459, 6
    %v461 = vsel %vm460, %v459, 6
    %vm462 = vcmp.eq.s32.totalorder %v56, %v461
    %v463 = vsel %vm462, 1, 0
    %v464 = vcvt.s32.f32 %v463
    %v465 = vmul.f32 %v464, %v355
    %v466 = vsel %vm341, %v465, 0.0
    %467 = vadd.xlane.f32.xlu0 %v466
    %v468 = vpop.xlane.xlu0 %467
    %v469 = vmax.f32 %v468, 1e-30
    %v470 = vlog2.pop %v469
    %v471 = vmul.f32 %v470, 0.6931472
    %vm472 = vcmp.eq.s32.totalorder %v50, 3
    %vm473 = vcmp.eq.s32.totalorder %v50, 4
    %vm474 = vmor %vm472, %vm473
    %vm475 = vcmp.lt.s32.totalorder %v461, 3
    %v476 = vsel %vm474, 4, 3
    %v477 = vsel %vm475, %v461, %v476
    %v478 = vsub.s32 %v461, 3
    %v479 = vsel %vm475, 0, %v478
    %v480 = vcvt.s32.f32 %v461
    %v481 = vcvt.s32.f32 %v477
    %v482 = vcvt.s32.f32 %v479
    %vm483 = vcmask 7168
    %v484 = vsel %vm483, %v480, %v481
    %vm485 = vcmask 15360
    %v486 = vsel %vm485, %v484, %v482
    %vm487 = vcmask 23552
    %v488 = vsel %vm487, %v486, %v471
    %vm489 = vcmask 31744
    %490 = vst.msk [vmem:[%s10] sm:$0xff] %vm489, %v488
    // Predicated region
    $region42: #{tpu_custom_call.1} parent=1 // pred_check
      _
    $region43: #{tpu_custom_call.1} parent=1 // pred_check_branch
      %492 = sbr.rel (0) target = $region45
    $region44: #{tpu_custom_call.1} parent=1 // pred_region
      %s494 = ssub.s32 128, 128
      %495 = vsyncadd [#allocation4], %s494
      %s497 = sshll.u32 [#allocation5], 4
      %s498 = int_to_ptr.vmem [resolvable:$true] %s497
      %500 = dma.vmem_to_hbm [thread:$0]  %s498, 128, %s9, [#allocation4]
    $region45: #{tpu_custom_call.1} parent=1 // pred_fallthru
      _
    // Predicated region
    $region46: #{tpu_custom_call.1} parent=1 // pred_check
      _
    $region47: #{tpu_custom_call.1} parent=1 // pred_check_branch
      %502 = sbr.rel (0) target = $region49
    $region48: #{tpu_custom_call.1} parent=1 // pred_region
      _
    $region49: #{tpu_custom_call.1} parent=1 // pred_fallthru
      _
    // Predicated region
    $region50: #{tpu_custom_call.1} parent=1 // pred_check
      _
    $region51: #{tpu_custom_call.1} parent=1 // pred_check_branch
      %504 = sbr.rel (0) target = $region53
    $region52: #{tpu_custom_call.1} parent=1 // pred_region
      %505 = dma.done [#allocation4], 128
    $region53: #{tpu_custom_call.1} parent=1 // pred_fallthru
      _
    // Predicated region
    $region54: #{tpu_custom_call.1} parent=1 // pred_check
      _
    $region55: #{tpu_custom_call.1} parent=1 // pred_check_branch
      %507 = sbr.rel (0) target = $region57
    $region56: #{tpu_custom_call.1} parent=1 // pred_region
      _
    $region57: #{tpu_custom_call.1} parent=1 // pred_fallthru
      _
    %508 = vsyncpa [#allocation3], 1
    %509 = vsyncpa [#allocation4], 1

</llo_original>
